<compile_context>
chip_gen: v6e
topology: v6e:2x2x1
jax: 0.10.0
libtpu: 0.0.40
codegen_flags: <defaults>
</compile_context>

<pallas_src>
import jax
import jax.numpy as jnp
from jax.experimental import pallas as pl
from jax.experimental.pallas import tpu as pltpu

_LANE = 128
_SUBLANE = 8


def _round_up(x, m):
    return ((x + m - 1) // m) * m


# ---------------------------------------------------------------------------
# Kernels
# ---------------------------------------------------------------------------

def _lr_kernel_rowdot(x_ref, w_ref, o_ref):
    """General path (D >= 128 or unpackable).

    w_ref is the already-softmaxed weight, lane-major (1, D), resident in VMEM
    (grid-invariant BlockSpec).  The (TM, D) @ (D, 1) matvec is a VPU
    broadcast-multiply + last-axis reduce instead of a width-1 MXU matvec.
    """
    x = x_ref[...].astype(jnp.float32)
    w = w_ref[...].astype(jnp.float32)                 # (1, D)
    logits = jnp.sum(x * w, axis=-1, keepdims=True)    # (TM, 1)
    o_ref[...] = (1.0 / (1.0 + jnp.exp(-logits))).astype(o_ref.dtype)


def _lr_kernel_packed(x_ref, w_ref, o_ref):
    """Lane-packed path (D < 128, 128 % D == 0).

    x_ref: (TM, k*D) lane-dense rows (k original rows per packed row).
    w_ref: (k*D, k) block-diagonal softmax(W), resident in VMEM.
    One lane-dense MXU dot produces the (TM, k) logits block.
    """
    logits = jnp.dot(x_ref[...].astype(jnp.float32),
                     w_ref[...].astype(jnp.float32),
                     preferred_element_type=jnp.float32)  # (TM, k)
    o_ref[...] = (1.0 / (1.0 + jnp.exp(-logits))).astype(o_ref.dtype)


# ---------------------------------------------------------------------------
# Tiling / wrapper
# ---------------------------------------------------------------------------

def _vmem_limit_bytes():
    """~3/4 of physical per-core VMEM, capped at 96 MiB.

    v5e/v6e (128 MiB) -> 96 MiB; v7x (64 MiB per TC) -> 48 MiB.  Falls back to
    a v7x-safe 48 MiB if the hardware query is unavailable.
    """
    cap = 64 * 1024 * 1024
    try:
        cap = int(pltpu.get_tpu_info().vmem_capacity_bytes)
    except Exception:
        pass
    return min((cap * 3) // 4, 96 * 1024 * 1024)


def _pick_tm(n_rows, padded_row_bytes, vmem_limit, min_grid_steps=8):
    """Rows per X tile.

    Target min(16 MiB, vmem_limit/4) bytes per (double-buffered) X buffer,
    computed with lane-padded bytes-per-row, then capped so the grid keeps at
    least `min_grid_steps` steps (keeps both v7x TensorCores fed and
    double-buffered) and doesn't exceed the (8-aligned) batch extent.
    """
    per_buffer = min(16 * 1024 * 1024, vmem_limit // 4)
    tm = max(_SUBLANE, per_buffer // max(padded_row_bytes, 1))
    tm = (tm // _SUBLANE) * _SUBLANE
    grid_cap = _round_up(pl.cdiv(n_rows, min_grid_steps), _SUBLANE)
    row_cap = _round_up(n_rows, _SUBLANE)
    return max(_SUBLANE, min(tm, grid_cap, row_cap))


def logistic_regression_forward(x, w):
    """sigmoid(X @ softmax(W, dim=0)) — forward of the PyTorch module."""
    n, d = x.shape
    assert w.shape == (d, 1)
    out_dtype = jnp.float32

    # Hoist softmax(W) out of the kernel (matches F.softmax(W, dim=0)).
    sm = jax.nn.softmax(w.astype(jnp.float32), axis=0)  # (D, 1)

    vmem_limit = _vmem_limit_bytes()
    cost = pl.CostEstimate(
        flops=2 * n * d,
        transcendentals=n,
        bytes_accessed=n * d * 4 + n * 4 + d * 4,
    )
    cparams = pltpu.CompilerParams(
        dimension_semantics=("parallel",),   # batch rows independent -> v7x 2-TC
        vmem_limit_bytes=int(vmem_limit),
    )

    pack = (0 < d < _LANE) and (_LANE % d == 0)
    if pack:
        k = _LANE // d
        n_pad = _round_up(n, k)
        x_in = jnp.pad(x, ((0, n_pad - n), (0, 0))) if n_pad != n else x
        xp = x_in.reshape(n_pad // k, k * d)             # (Np, 128) lane-dense
        # Block-diagonal softmax weights: wp[j*d + t, j] = softmax(W)[t]
        sm_vec = sm[:, 0]                                # (D,)
        wp = (jnp.eye(k, dtype=jnp.float32)[:, None, :]
              * sm_vec[None, :, None]).reshape(k * d, k)  # (k*D, k)

        np_rows, dp = xp.shape
        tm = _pick_tm(np_rows, 4 * _round_up(dp, _LANE), vmem_limit)
        grid = (pl.cdiv(np_rows, tm),)

        out_packed = pl.pallas_call(
            _lr_kernel_packed,
            out_shape=jax.ShapeDtypeStruct((np_rows, k), out_dtype),
            grid=grid,
            in_specs=[
                pl.BlockSpec((tm, dp), lambda i: (i, 0)),  # X streamed/pipelined
                pl.BlockSpec((dp, k), lambda i: (0, 0)),   # packed W resident
            ],
            out_specs=pl.BlockSpec((tm, k), lambda i: (i, 0)),
            compiler_params=cparams,
            cost_estimate=cost,
        )(xp, wp)
        return out_packed.reshape(n_pad, 1)[:n]

    # General path: weights lane-major, VPU broadcast-multiply + lane reduce.
    w_row = sm.reshape(1, d)
    tm = _pick_tm(n, 4 * _round_up(d, _LANE), vmem_limit)
    grid = (pl.cdiv(n, tm),)

    return pl.pallas_call(
        _lr_kernel_rowdot,
        out_shape=jax.ShapeDtypeStruct((n, 1), out_dtype),
        grid=grid,
        in_specs=[
            pl.BlockSpec((tm, d), lambda i: (i, 0)),       # X streamed/pipelined
            pl.BlockSpec((1, d), lambda i: (0, 0)),        # W resident
        ],
        out_specs=pl.BlockSpec((tm, 1), lambda i: (i, 0)),
        compiler_params=cparams,
        cost_estimate=cost,
    )(x, w_row)


def xavier_uniform(key, shape, gain=1.414, dtype=jnp.float32):
    # Matches nn.init.xavier_uniform_ for a 2-D (dimension, 1) tensor.
    fan_in, fan_out = shape[1], shape[0]
    bound = gain * (6.0 / (fan_in + fan_out)) ** 0.5
    return jax.random.uniform(key, shape, dtype=dtype, minval=-bound, maxval=bound)


if __name__ == "__main__":
    key = jax.random.PRNGKey(0)
    k_x, k_w, k_x2, k_w2 = jax.random.split(key, 4)

    # Small-D case (typical module shape): exercises the lane-packed MXU path.
    batch, dimension = 8, 32
    x = jax.random.normal(k_x, (batch, dimension), dtype=jnp.float32)
    w = xavier_uniform(k_w, (dimension, 1), gain=1.414)
    out = jax.block_until_ready(logistic_regression_forward(x, w))
    ref = jax.nn.sigmoid(x @ jax.nn.softmax(w, axis=0))
    assert out.shape == (batch, 1)
    assert jnp.allclose(out, ref, atol=1e-4, rtol=1e-4), (out, ref)

    # Wide-D case: exercises the general VPU row-dot path.
    batch2, dimension2 = 16, 256
    x2 = jax.random.normal(k_x2, (batch2, dimension2), dtype=jnp.float32)
    w2 = xavier_uniform(k_w2, (dimension2, 1), gain=1.414)
    out2 = jax.block_until_ready(logistic_regression_forward(x2, w2))
    ref2 = jax.nn.sigmoid(x2 @ jax.nn.softmax(w2, axis=0))
    assert out2.shape == (batch2, 1)
    assert jnp.allclose(out2, ref2, atol=1e-4, rtol=1e-4), (out2, ref2)

    print("KERNEL_OK")
</pallas_src>

<mosaic_0001>
module attributes {stable_mosaic.version = 11 : i64} {
  func.func @_lr_kernel_packed(%arg0: i32, %arg1: memref<8x128xf32, #tpu.memory_space<vmem>>, %arg2: memref<128x4xf32, #tpu.memory_space<vmem>>, %arg3: memref<8x4xf32, #tpu.memory_space<vmem>>) attributes {dimension_semantics = [#tpu.dimension_semantics<parallel>], iteration_bounds = array<i64: 1>, scalar_prefetch = 0 : i64, scratch_operands = 0 : i64, tpu.core_type = #tpu.core_type<tc>, window_params = [{transform_indices = @transform_0, window_bounds = array<i64: 8, 128>}, {pipeline_mode = #tpu.pipeline_mode<synchronous>, transform_indices = @transform_1, window_bounds = array<i64: 128, 4>}, {transform_indices = @transform_2, window_bounds = array<i64: 8, 4>}]} {
    %c0 = arith.constant 0 : index
    %c0_0 = arith.constant 0 : index
    %0 = vector.load %arg1[%c0, %c0_0] : memref<8x128xf32, #tpu.memory_space<vmem>>, vector<8x128xf32>
    %c0_1 = arith.constant 0 : index
    %c0_2 = arith.constant 0 : index
    %1 = vector.load %arg2[%c0_1, %c0_2] : memref<128x4xf32, #tpu.memory_space<vmem>>, vector<128x4xf32>
    %cst = arith.constant dense<0.000000e+00> : vector<8x4xf32>
    %2 = tpu.matmul %0, %1, %cst {dimension_numbers = #tpu.dot_dimension_numbers<[1], [0], [0], [1], [0, 0, 1, 1], [], []>} : vector<8x128xf32>, vector<128x4xf32>, vector<8x4xf32> -> vector<8x4xf32>
    %cst_3 = arith.constant 0.000000e+00 : f32
    %3 = vector.broadcast %cst_3 : f32 to vector<8x4xf32>
    %4 = arith.subf %3, %2 : vector<8x4xf32>
    %5 = math.exp %4 : vector<8x4xf32>
    %cst_4 = arith.constant 1.000000e+00 : f32
    %6 = vector.broadcast %cst_4 : f32 to vector<8x4xf32>
    %7 = arith.addf %6, %5 : vector<8x4xf32>
    %cst_5 = arith.constant 1.000000e+00 : f32
    %8 = vector.broadcast %cst_5 : f32 to vector<8x4xf32>
    %9 = arith.divf %8, %7 : vector<8x4xf32>
    %c0_6 = arith.constant 0 : index
    %c0_7 = arith.constant 0 : index
    %10 = vector.load %arg3[%c0_6, %c0_7] : memref<8x4xf32, #tpu.memory_space<vmem>>, vector<8x4xf32>
    tpu.vector_store %arg3[%c0_6, %c0_7], %9 {strides = array<i32>} : memref<8x4xf32, #tpu.memory_space<vmem>>, vector<8x4xf32>,
    return
  }
  func.func @transform_0(%arg0: i32) -> (i32, i32) {
    %c0_i32 = arith.constant 0 : i32
    %c0_i32_0 = arith.constant 0 : i32
    return %arg0, %c0_i32 : i32, i32
  }
  func.func @transform_1(%arg0: i32) -> (i32, i32) {
    %c0_i32 = arith.constant 0 : i32
    %c0_i32_0 = arith.constant 0 : i32
    %c0_i32_1 = arith.constant 0 : i32
    return %c0_i32, %c0_i32_0 : i32, i32
  }
  func.func @transform_2(%arg0: i32) -> (i32, i32) {
    %c0_i32 = arith.constant 0 : i32
    %c0_i32_0 = arith.constant 0 : i32
    return %arg0, %c0_i32 : i32, i32
  }
}

</mosaic_0001>

<llo_original>
// kernel: tpu_custom_call.1
$region0: #{tpu_custom_call.1}
  #allocation0 [shape = 'u32[]', space=smem, size = 0x4, offset = 0x4, fixed_abs, tag = 'smem constant byte address 0x4 - core index']
  #allocation1 [shape = 'u32[144,128]{1,0:T(1,128)}', space=vmem, size = 0x12000, scoped, tag = 'internal scratch']
  %s0 = inlined_call_operand.vmem [shape: f32[2,128], index: 0, kind: input, shape index: {}]
  %s1 = inlined_call_operand.vmem [shape: f32[128,4], index: 1, kind: input, shape index: {}]
  %s2 = inlined_call_operand.hbm [shape: f32[2,4], index: 2, kind: output, shape index: {}]
  %s3 = sld [smem:[#allocation0]]
  $region18: #{tpu_custom_call.1} parent=0
    _
  %s5 = ssub.s32 1, %s3
  %s6 = scalar_select 0, %s5, %s3
  $region1: #{tpu_custom_call.1} parent=0
    #allocation2 [shape = 'u8[4096]{0}', space=vmem, size = 0x1000, scoped, tag = 'output window, operand 0, single buffered']
    #allocation3 [shape = 's32[1]{0}', space=sflag, size = 0x4, scoped, tag = 'scoped memory for tpu_custom_call.1']
    %7 = vsyncpa [#allocation3], 0
    // Predicated region
    $region2: #{tpu_custom_call.1} parent=1 // pred_check
      _
    $region3: #{tpu_custom_call.1} parent=1 // pred_check_branch
      %9 = sbr.rel (0) target = $region5
    $region4: #{tpu_custom_call.1} parent=1 // pred_region
      _
    $region5: #{tpu_custom_call.1} parent=1 // pred_fallthru
      _
    // Predicated region
    $region6: #{tpu_custom_call.1} parent=1 // pred_check
      _
    $region7: #{tpu_custom_call.1} parent=1 // pred_check_branch
      %11 = sbr.rel (0) target = $region9
    $region8: #{tpu_custom_call.1} parent=1 // pred_region
      _
    $region9: #{tpu_custom_call.1} parent=1 // pred_fallthru
      _
    %v12 = vld [vmem:[%s0] sm:$0xff]
    %v13 = vld [vmem:[%s1] sm:$0xff]
    %v14 = vld [vmem:[%s1 + $0x8] sm:$0xff]
    %v15 = vld [vmem:[%s1 + $0x10] sm:$0xff]
    %v16 = vld [vmem:[%s1 + $0x18] sm:$0xff]
    %v17 = vld [vmem:[%s1 + $0x20] sm:$0xff]
    %v18 = vld [vmem:[%s1 + $0x28] sm:$0xff]
    %v19 = vld [vmem:[%s1 + $0x30] sm:$0xff]
    %v20 = vld [vmem:[%s1 + $0x38] sm:$0xff]
    %v21 = vld [vmem:[%s1 + $0x40] sm:$0xff]
    %v22 = vld [vmem:[%s1 + $0x48] sm:$0xff]
    %v23 = vld [vmem:[%s1 + $0x50] sm:$0xff]
    %v24 = vld [vmem:[%s1 + $0x58] sm:$0xff]
    %v25 = vld [vmem:[%s1 + $0x60] sm:$0xff]
    %v26 = vld [vmem:[%s1 + $0x68] sm:$0xff]
    %v27 = vld [vmem:[%s1 + $0x70] sm:$0xff]
    %v28 = vld [vmem:[%s1 + $0x78] sm:$0xff]
    %29 = vmatprep.subr.mxu0 0.0
    %30 = vmatpush1.msra.mxu0 %v28
    %31 = vmatprep.subr.mxu0 0.0
    %32 = vmatpush1.msra.mxu0 %v27
    %33 = vmatprep.subr.mxu0 0.0
    %34 = vmatpush1.msra.mxu0 %v26
    %35 = vmatprep.subr.mxu0 0.0
    %36 = vmatpush1.msra.mxu0 %v25
    %37 = vmatprep.subr.mxu0 0.0
    %38 = vmatpush1.msra.mxu0 %v24
    %39 = vmatprep.subr.mxu0 0.0
    %40 = vmatpush1.msra.mxu0 %v23
    %41 = vmatprep.subr.mxu0 0.0
    %42 = vmatpush1.msra.mxu0 %v22
    %43 = vmatprep.subr.mxu0 0.0
    %44 = vmatpush1.msra.mxu0 %v21
    %45 = vmatprep.subr.mxu0 0.0
    %46 = vmatpush1.msra.mxu0 %v20
    %47 = vmatprep.subr.mxu0 0.0
    %48 = vmatpush1.msra.mxu0 %v19
    %49 = vmatprep.subr.mxu0 0.0
    %50 = vmatpush1.msra.mxu0 %v18
    %51 = vmatprep.subr.mxu0 0.0
    %52 = vmatpush1.msra.mxu0 %v17
    %53 = vmatprep.subr.mxu0 0.0
    %54 = vmatpush1.msra.mxu0 %v16
    %55 = vmatprep.subr.mxu0 0.0
    %56 = vmatpush1.msra.mxu0 %v15
    %57 = vmatprep.subr.mxu0 0.0
    %58 = vmatpush1.msra.mxu0 %v14
    %59 = vmatprep.subr.mxu0 0.0
    %60 = vmatpush1.msra.mxu0 %v13
    %61 = vmatprep.subr.mxu0 0.0
    %62 = vmatpush2.msra.mxu0 0.0
    %63 = vmatprep.subr.mxu0 0.0
    %64 = vmatpush2.msra.mxu0 0.0
    %65 = vmatprep.subr.mxu0 0.0
    %66 = vmatpush2.msra.mxu0 0.0
    %67 = vmatprep.subr.mxu0 0.0
    %68 = vmatpush2.msra.mxu0 0.0
    %69 = vmatprep.subr.mxu0 0.0
    %70 = vmatpush2.msra.mxu0 0.0
    %71 = vmatprep.subr.mxu0 0.0
    %72 = vmatpush2.msra.mxu0 0.0
    %73 = vmatprep.subr.mxu0 0.0
    %74 = vmatpush2.msra.mxu0 0.0
    %75 = vmatprep.subr.mxu0 0.0
    %76 = vmatpush2.msra.mxu0 0.0
    %77 = vmatprep.subr.mxu0 0.0
    %78 = vmatpush2.msra.mxu0 0.0
    %79 = vmatprep.subr.mxu0 0.0
    %80 = vmatpush2.msra.mxu0 0.0
    %81 = vmatprep.subr.mxu0 0.0
    %82 = vmatpush2.msra.mxu0 0.0
    %83 = vmatprep.subr.mxu0 0.0
    %84 = vmatpush2.msra.mxu0 0.0
    %85 = vmatprep.subr.mxu0 0.0
    %86 = vmatpush2.msra.mxu0 0.0
    %87 = vmatprep.subr.mxu0 0.0
    %88 = vmatpush2.msra.mxu0 0.0
    %89 = vmatprep.subr.mxu0 0.0
    %90 = vmatpush2.msra.mxu0 0.0
    %91 = vmatprep.subr.mxu0 0.0
    %92 = vmatpush2.msra.mxu0 0.0
    %93 = vmatprep.mubr.f32.mxu0 0.0
    %94 = vmatmul.mubr.f32.gmra.mxu0 %v12
    %v95 = vpop.f32.mrf.mxu0
    %v96 = vadd.f32 0.0, %v95
    %v97 = vpop.f32.mrf.mxu0
    %98 = vdwg.mxu0
    %v99 = vsub.f32 0.0, %v96
    %v100 = vmul.f32 %v99, 1.442695
    %v101 = vpow.pop %v100
    %v102 = vadd.f32 %v101, 1.0
    %v103 = vrcp.pop %v102
    %v104 = vmul.f32 1.0, %v103
    %vm105 = vcmask 31744
    %106 = vst.msk [vmem:[#allocation2] sm:$0xff] %vm105, %v104
    // Predicated region
    $region10: #{tpu_custom_call.1} parent=1 // pred_check
      _
    $region11: #{tpu_custom_call.1} parent=1 // pred_check_branch
      %108 = sbr.rel (0) target = $region13
    $region12: #{tpu_custom_call.1} parent=1 // pred_region
      %s110 = ssub.s32 128, 32
      %111 = vsyncadd [#allocation3], %s110
      %s112 = sshll.u32 [#allocation2], 4
      %s113 = int_to_ptr.vmem [resolvable:$true] %s112
      %118 = dma.vmem_to_hbm [thread:$0]  %s113, 32, %s2, [#allocation3], 32, 32, 2
    $region13: #{tpu_custom_call.1} parent=1 // pred_fallthru
      _
    // Predicated region
    $region14: #{tpu_custom_call.1} parent=1 // pred_check
      _
    $region15: #{tpu_custom_call.1} parent=1 // pred_check_branch
      %120 = sbr.rel (0) target = $region17
    $region16: #{tpu_custom_call.1} parent=1 // pred_region
      %121 = dma.done [#allocation3], 128
    $region17: #{tpu_custom_call.1} parent=1 // pred_fallthru
      _
    %122 = vsyncpa [#allocation3], 1

</llo_original>
